<compile_context>
chip_gen: v7x
topology: tpu7x:2x2x1
jax: 0.10.0
libtpu: 0.0.40
codegen_flags: <defaults>
</compile_context>

<pallas_src>
import math

import jax
import jax.numpy as jnp
from jax.experimental import pallas as pl
from jax.experimental.pallas import tpu as pltpu

_LANES = 128
# Per grid step at 4096 rows: 2 f32 in + 4 f32 out + 3 u8/bool out
# ~= 13.6 MiB; double-buffered ~= 27-28 MiB.  We request a 48 MiB scoped-VMEM
# budget, which leaves headroom on v7x (64 MiB/TC) and is far below the
# 128 MiB physical VMEM on v5e/v6e.
_MAX_TILE_ROWS = 4096
_TARGET_GRID_STEPS = 4          # >=2 grid steps so v7x megacore gets both TCs
_VMEM_LIMIT_BYTES = 48 << 20


def _round_up(x, m):
    return ((x + m - 1) // m) * m


def _elementwise_kernel(a_ref, b_ref,
                        add_ref, sub_ref, mul_ref, div_ref,
                        gt_ref, lt_ref, eq_ref):
    a = a_ref[...]
    b = b_ref[...]
    add_ref[...] = a + b
    sub_ref[...] = a - b
    mul_ref[...] = a * b
    # Exact VPU/EUP divide: the kernel is HBM-bound, so the divide is free and
    # approx reciprocal would only cost parity with the PyTorch reference.
    div_ref[...] = a / (b + jnp.asarray(1e-6, b.dtype))
    # Comparisons stored in the output ref's dtype (bool preferred, u8 fallback).
    gt_ref[...] = (a > b).astype(gt_ref.dtype)
    lt_ref[...] = (a < b).astype(lt_ref.dtype)
    eq_ref[...] = (a == b).astype(eq_ref.dtype)


def _build_call(rows, tile_r, dtype, cmp_dtype):
    grid = (pl.cdiv(rows, tile_r),)
    spec = pl.BlockSpec((tile_r, _LANES), lambda i: (i, 0))
    out_shapes = tuple(
        [jax.ShapeDtypeStruct((rows, _LANES), dtype)] * 4
        + [jax.ShapeDtypeStruct((rows, _LANES), cmp_dtype)] * 3
    )
    return pl.pallas_call(
        _elementwise_kernel,
        out_shape=out_shapes,
        grid=grid,
        in_specs=[spec, spec],
        out_specs=tuple(spec for _ in out_shapes),
        compiler_params=pltpu.CompilerParams(
            dimension_semantics=("parallel",),
            vmem_limit_bytes=_VMEM_LIMIT_BYTES,
        ),
    )


def pt_module_forward(x1, x2):
    """Reproduces PtModule.forward:
    returns (add, sub, mul, x1/(x2+1e-6), x1>x2, x1<x2, x1==x2)."""
    assert x1.shape == x2.shape and x1.dtype == x2.dtype
    orig_shape = x1.shape
    dtype = x1.dtype
    total = int(math.prod(orig_shape)) if orig_shape else 1

    if total == 0:  # degenerate empty input: no kernel launch
        zf = jnp.zeros(orig_shape, dtype)
        zb = jnp.zeros(orig_shape, jnp.bool_)
        return (zf, zf, zf, zf, zb, zb, zb)

    rows = pl.cdiv(total, _LANES)
    padded_total = rows * _LANES

    # Tile choice: aim for >= _TARGET_GRID_STEPS grid steps (v7x megacore),
    # keep the tile a multiple of 32 rows (packed u8/bool sublane tiling) when
    # it is not the full array, and cap it by the VMEM budget.  The final grid
    # step may be a partial block (Pallas masks the OOB writeback).
    tile_r = min(_MAX_TILE_ROWS,
                 max(32, _round_up(pl.cdiv(rows, _TARGET_GRID_STEPS), 32)))
    if tile_r >= rows:
        tile_r = rows  # single block with full-dim block shape (always legal)

    def _to_slab(x):
        flat = x.reshape(-1)
        if padded_total != total:  # only when total % 128 != 0 (<=127 elems)
            flat = jnp.pad(flat, (0, padded_total - total))
        return flat.reshape(rows, _LANES)

    a = _to_slab(x1)
    b = _to_slab(x2)

    try:
        outs = _build_call(rows, tile_r, dtype, jnp.bool_)(a, b)
        cast_back = False
    except Exception:
        # Fallback if this Mosaic build rejects bool VMEM stores: keep uint8
        # through the kernel and cast once outside.
        outs = _build_call(rows, tile_r, dtype, jnp.uint8)(a, b)
        cast_back = True

    def _from_slab(o, is_cmp):
        flat = o.reshape(-1)
        if padded_total != total:
            flat = flat[:total]
        out = flat.reshape(orig_shape)
        if is_cmp and cast_back:
            out = out.astype(jnp.bool_)
        return out

    add_o, sub_o, mul_o, div_o, gt_o, lt_o, eq_o = outs
    return (
        _from_slab(add_o, False),
        _from_slab(sub_o, False),
        _from_slab(mul_o, False),
        _from_slab(div_o, False),
        _from_slab(gt_o, True),
        _from_slab(lt_o, True),
        _from_slab(eq_o, True),
    )


if __name__ == "__main__":
    key = jax.random.PRNGKey(0)
    k1, k2 = jax.random.split(key)
    shape = (2, 4, 16, 16)  # NCHW, small synthetic shapes
    x1 = jax.random.normal(k1, shape, dtype=jnp.float32)
    x2 = jax.random.normal(k2, shape, dtype=jnp.float32)
    # make a few entries exactly equal so `equal_to` is nontrivial
    x2 = x2.at[0, 0, 0, :4].set(x1[0, 0, 0, :4])

    outs = pt_module_forward(x1, x2)
    jax.block_until_ready(outs)

    # correctness check against plain JAX
    refs = (
        x1 + x2,
        x1 - x2,
        x1 * x2,
        x1 / (x2 + 1e-6),
        x1 > x2,
        x1 < x2,
        x1 == x2,
    )
    for got, ref in zip(outs, refs):
        assert got.shape == ref.shape and got.dtype == ref.dtype
        if got.dtype == jnp.bool_:
            assert bool(jnp.all(got == ref))
        else:
            assert bool(jnp.allclose(got, ref, rtol=1e-6, atol=1e-6))

    print("KERNEL_OK")
</pallas_src>

<mosaic_0001>
module attributes {stable_mosaic.version = 11 : i64} {
  func.func @_elementwise_kernel(%arg0: i32, %arg1: memref<16x128xf32, #tpu.memory_space<vmem>>, %arg2: memref<16x128xf32, #tpu.memory_space<vmem>>, %arg3: memref<16x128xf32, #tpu.memory_space<vmem>>, %arg4: memref<16x128xf32, #tpu.memory_space<vmem>>, %arg5: memref<16x128xf32, #tpu.memory_space<vmem>>, %arg6: memref<16x128xf32, #tpu.memory_space<vmem>>, %arg7: memref<16x128xi32, #tpu.memory_space<vmem>>, %arg8: memref<16x128xi32, #tpu.memory_space<vmem>>, %arg9: memref<16x128xi32, #tpu.memory_space<vmem>>) attributes {dimension_semantics = [#tpu.dimension_semantics<parallel>], iteration_bounds = array<i64: 1>, scalar_prefetch = 0 : i64, scratch_operands = 0 : i64, tpu.core_type = #tpu.core_type<tc>, window_params = [{transform_indices = @transform_0, window_bounds = array<i64: 16, 128>}, {transform_indices = @transform_1, window_bounds = array<i64: 16, 128>}, {transform_indices = @transform_2, window_bounds = array<i64: 16, 128>}, {transform_indices = @transform_3, window_bounds = array<i64: 16, 128>}, {transform_indices = @transform_4, window_bounds = array<i64: 16, 128>}, {transform_indices = @transform_5, window_bounds = array<i64: 16, 128>}, {transform_indices = @transform_6, window_bounds = array<i64: 16, 128>}, {transform_indices = @transform_7, window_bounds = array<i64: 16, 128>}, {transform_indices = @transform_8, window_bounds = array<i64: 16, 128>}]} {
    %c0 = arith.constant 0 : index
    %c0_0 = arith.constant 0 : index
    %0 = vector.load %arg1[%c0, %c0_0] : memref<16x128xf32, #tpu.memory_space<vmem>>, vector<16x128xf32>
    %c0_1 = arith.constant 0 : index
    %c0_2 = arith.constant 0 : index
    %1 = vector.load %arg2[%c0_1, %c0_2] : memref<16x128xf32, #tpu.memory_space<vmem>>, vector<16x128xf32>
    %2 = arith.addf %0, %1 : vector<16x128xf32>
    %c0_3 = arith.constant 0 : index
    %c0_4 = arith.constant 0 : index
    %3 = vector.load %arg3[%c0_3, %c0_4] : memref<16x128xf32, #tpu.memory_space<vmem>>, vector<16x128xf32>
    tpu.vector_store %arg3[%c0_3, %c0_4], %2 {strides = array<i32>} : memref<16x128xf32, #tpu.memory_space<vmem>>, vector<16x128xf32>,
    %4 = arith.subf %0, %1 : vector<16x128xf32>
    %c0_5 = arith.constant 0 : index
    %c0_6 = arith.constant 0 : index
    %5 = vector.load %arg4[%c0_5, %c0_6] : memref<16x128xf32, #tpu.memory_space<vmem>>, vector<16x128xf32>
    tpu.vector_store %arg4[%c0_5, %c0_6], %4 {strides = array<i32>} : memref<16x128xf32, #tpu.memory_space<vmem>>, vector<16x128xf32>,
    %6 = arith.mulf %0, %1 : vector<16x128xf32>
    %c0_7 = arith.constant 0 : index
    %c0_8 = arith.constant 0 : index
    %7 = vector.load %arg5[%c0_7, %c0_8] : memref<16x128xf32, #tpu.memory_space<vmem>>, vector<16x128xf32>
    tpu.vector_store %arg5[%c0_7, %c0_8], %6 {strides = array<i32>} : memref<16x128xf32, #tpu.memory_space<vmem>>, vector<16x128xf32>,
    %cst = arith.constant 9.99999997E-7 : f32
    %8 = vector.broadcast %cst : f32 to vector<16x128xf32>
    %9 = arith.addf %1, %8 : vector<16x128xf32>
    %10 = arith.divf %0, %9 : vector<16x128xf32>
    %c0_9 = arith.constant 0 : index
    %c0_10 = arith.constant 0 : index
    %11 = vector.load %arg6[%c0_9, %c0_10] : memref<16x128xf32, #tpu.memory_space<vmem>>, vector<16x128xf32>
    tpu.vector_store %arg6[%c0_9, %c0_10], %10 {strides = array<i32>} : memref<16x128xf32, #tpu.memory_space<vmem>>, vector<16x128xf32>,
    %12 = arith.cmpf ogt, %0, %1 : vector<16x128xf32>
    %c0_11 = arith.constant 0 : index
    %c0_12 = arith.constant 0 : index
    %13 = vector.load %arg7[%c0_11, %c0_12] : memref<16x128xi32, #tpu.memory_space<vmem>>, vector<16x128xi32>
    %14 = arith.extui %12 : vector<16x128xi1> to vector<16x128xi32>
    %cst_13 = arith.constant dense<0> : vector<16x128xi32>
    %15 = arith.cmpi ne, %13, %cst_13 : vector<16x128xi32>
    tpu.vector_store %arg7[%c0_11, %c0_12], %14 {strides = array<i32>} : memref<16x128xi32, #tpu.memory_space<vmem>>, vector<16x128xi32>,
    %16 = arith.cmpf olt, %0, %1 : vector<16x128xf32>
    %c0_14 = arith.constant 0 : index
    %c0_15 = arith.constant 0 : index
    %17 = vector.load %arg8[%c0_14, %c0_15] : memref<16x128xi32, #tpu.memory_space<vmem>>, vector<16x128xi32>
    %18 = arith.extui %16 : vector<16x128xi1> to vector<16x128xi32>
    %cst_16 = arith.constant dense<0> : vector<16x128xi32>
    %19 = arith.cmpi ne, %17, %cst_16 : vector<16x128xi32>
    tpu.vector_store %arg8[%c0_14, %c0_15], %18 {strides = array<i32>} : memref<16x128xi32, #tpu.memory_space<vmem>>, vector<16x128xi32>,
    %20 = arith.cmpf oeq, %0, %1 : vector<16x128xf32>
    %c0_17 = arith.constant 0 : index
    %c0_18 = arith.constant 0 : index
    %21 = vector.load %arg9[%c0_17, %c0_18] : memref<16x128xi32, #tpu.memory_space<vmem>>, vector<16x128xi32>
    %22 = arith.extui %20 : vector<16x128xi1> to vector<16x128xi32>
    %cst_19 = arith.constant dense<0> : vector<16x128xi32>
    %23 = arith.cmpi ne, %21, %cst_19 : vector<16x128xi32>
    tpu.vector_store %arg9[%c0_17, %c0_18], %22 {strides = array<i32>} : memref<16x128xi32, #tpu.memory_space<vmem>>, vector<16x128xi32>,
    return
  }
  func.func @transform_0(%arg0: i32) -> (i32, i32) {
    %c0_i32 = arith.constant 0 : i32
    %c0_i32_0 = arith.constant 0 : i32
    return %arg0, %c0_i32 : i32, i32
  }
  func.func @transform_1(%arg0: i32) -> (i32, i32) {
    %c0_i32 = arith.constant 0 : i32
    %c0_i32_0 = arith.constant 0 : i32
    return %arg0, %c0_i32 : i32, i32
  }
  func.func @transform_2(%arg0: i32) -> (i32, i32) {
    %c0_i32 = arith.constant 0 : i32
    %c0_i32_0 = arith.constant 0 : i32
    return %arg0, %c0_i32 : i32, i32
  }
  func.func @transform_3(%arg0: i32) -> (i32, i32) {
    %c0_i32 = arith.constant 0 : i32
    %c0_i32_0 = arith.constant 0 : i32
    return %arg0, %c0_i32 : i32, i32
  }
  func.func @transform_4(%arg0: i32) -> (i32, i32) {
    %c0_i32 = arith.constant 0 : i32
    %c0_i32_0 = arith.constant 0 : i32
    return %arg0, %c0_i32 : i32, i32
  }
  func.func @transform_5(%arg0: i32) -> (i32, i32) {
    %c0_i32 = arith.constant 0 : i32
    %c0_i32_0 = arith.constant 0 : i32
    return %arg0, %c0_i32 : i32, i32
  }
  func.func @transform_6(%arg0: i32) -> (i32, i32) {
    %c0_i32 = arith.constant 0 : i32
    %c0_i32_0 = arith.constant 0 : i32
    return %arg0, %c0_i32 : i32, i32
  }
  func.func @transform_7(%arg0: i32) -> (i32, i32) {
    %c0_i32 = arith.constant 0 : i32
    %c0_i32_0 = arith.constant 0 : i32
    return %arg0, %c0_i32 : i32, i32
  }
  func.func @transform_8(%arg0: i32) -> (i32, i32) {
    %c0_i32 = arith.constant 0 : i32
    %c0_i32_0 = arith.constant 0 : i32
    return %arg0, %c0_i32 : i32, i32
  }
}

module attributes {stable_mosaic.version = 11 : i64} {
  func.func @_elementwise_kernel(%arg0: i32, %arg1: memref<16x128xf32, #tpu.memory_space<vmem>>, %arg2: memref<16x128xf32, #tpu.memory_space<vmem>>, %arg3: memref<16x128xf32, #tpu.memory_space<vmem>>, %arg4: memref<16x128xf32, #tpu.memory_space<vmem>>, %arg5: memref<16x128xf32, #tpu.memory_space<vmem>>, %arg6: memref<16x128xf32, #tpu.memory_space<vmem>>, %arg7: memref<16x128xi8, #tpu.memory_space<vmem>>, %arg8: memref<16x128xi8, #tpu.memory_space<vmem>>, %arg9: memref<16x128xi8, #tpu.memory_space<vmem>>) attributes {dimension_semantics = [#tpu.dimension_semantics<parallel>], iteration_bounds = array<i64: 1>, scalar_prefetch = 0 : i64, scratch_operands = 0 : i64, tpu.core_type = #tpu.core_type<tc>, window_params = [{transform_indices = @transform_0, window_bounds = array<i64: 16, 128>}, {transform_indices = @transform_1, window_bounds = array<i64: 16, 128>}, {transform_indices = @transform_2, window_bounds = array<i64: 16, 128>}, {transform_indices = @transform_3, window_bounds = array<i64: 16, 128>}, {transform_indices = @transform_4, window_bounds = array<i64: 16, 128>}, {transform_indices = @transform_5, window_bounds = array<i64: 16, 128>}, {transform_indices = @transform_6, window_bounds = array<i64: 16, 128>}, {transform_indices = @transform_7, window_bounds = array<i64: 16, 128>}, {transform_indices = @transform_8, window_bounds = array<i64: 16, 128>}]} {
    %c0 = arith.constant 0 : index
    %c0_0 = arith.constant 0 : index
    %0 = vector.load %arg1[%c0, %c0_0] : memref<16x128xf32, #tpu.memory_space<vmem>>, vector<16x128xf32>
    %c0_1 = arith.constant 0 : index
    %c0_2 = arith.constant 0 : index
    %1 = vector.load %arg2[%c0_1, %c0_2] : memref<16x128xf32, #tpu.memory_space<vmem>>, vector<16x128xf32>
    %2 = arith.addf %0, %1 : vector<16x128xf32>
    %c0_3 = arith.constant 0 : index
    %c0_4 = arith.constant 0 : index
    %3 = vector.load %arg3[%c0_3, %c0_4] : memref<16x128xf32, #tpu.memory_space<vmem>>, vector<16x128xf32>
    tpu.vector_store %arg3[%c0_3, %c0_4], %2 {strides = array<i32>} : memref<16x128xf32, #tpu.memory_space<vmem>>, vector<16x128xf32>,
    %4 = arith.subf %0, %1 : vector<16x128xf32>
    %c0_5 = arith.constant 0 : index
    %c0_6 = arith.constant 0 : index
    %5 = vector.load %arg4[%c0_5, %c0_6] : memref<16x128xf32, #tpu.memory_space<vmem>>, vector<16x128xf32>
    tpu.vector_store %arg4[%c0_5, %c0_6], %4 {strides = array<i32>} : memref<16x128xf32, #tpu.memory_space<vmem>>, vector<16x128xf32>,
    %6 = arith.mulf %0, %1 : vector<16x128xf32>
    %c0_7 = arith.constant 0 : index
    %c0_8 = arith.constant 0 : index
    %7 = vector.load %arg5[%c0_7, %c0_8] : memref<16x128xf32, #tpu.memory_space<vmem>>, vector<16x128xf32>
    tpu.vector_store %arg5[%c0_7, %c0_8], %6 {strides = array<i32>} : memref<16x128xf32, #tpu.memory_space<vmem>>, vector<16x128xf32>,
    %cst = arith.constant 9.99999997E-7 : f32
    %8 = vector.broadcast %cst : f32 to vector<16x128xf32>
    %9 = arith.addf %1, %8 : vector<16x128xf32>
    %10 = arith.divf %0, %9 : vector<16x128xf32>
    %c0_9 = arith.constant 0 : index
    %c0_10 = arith.constant 0 : index
    %11 = vector.load %arg6[%c0_9, %c0_10] : memref<16x128xf32, #tpu.memory_space<vmem>>, vector<16x128xf32>
    tpu.vector_store %arg6[%c0_9, %c0_10], %10 {strides = array<i32>} : memref<16x128xf32, #tpu.memory_space<vmem>>, vector<16x128xf32>,
    %12 = arith.cmpf ogt, %0, %1 : vector<16x128xf32>
    %13 = arith.extui %12 : vector<16x128xi1> to vector<16x128xi8>
    %c0_11 = arith.constant 0 : index
    %c0_12 = arith.constant 0 : index
    %14 = vector.load %arg7[%c0_11, %c0_12] : memref<16x128xi8, #tpu.memory_space<vmem>>, vector<16x128xi8>
    tpu.vector_store %arg7[%c0_11, %c0_12], %13 {strides = array<i32>} : memref<16x128xi8, #tpu.memory_space<vmem>>, vector<16x128xi8>,
    %15 = arith.cmpf olt, %0, %1 : vector<16x128xf32>
    %16 = arith.extui %15 : vector<16x128xi1> to vector<16x128xi8>
    %c0_13 = arith.constant 0 : index
    %c0_14 = arith.constant 0 : index
    %17 = vector.load %arg8[%c0_13, %c0_14] : memref<16x128xi8, #tpu.memory_space<vmem>>, vector<16x128xi8>
    tpu.vector_store %arg8[%c0_13, %c0_14], %16 {strides = array<i32>} : memref<16x128xi8, #tpu.memory_space<vmem>>, vector<16x128xi8>,
    %18 = arith.cmpf oeq, %0, %1 : vector<16x128xf32>
    %19 = arith.extui %18 : vector<16x128xi1> to vector<16x128xi8>
    %c0_15 = arith.constant 0 : index
    %c0_16 = arith.constant 0 : index
    %20 = vector.load %arg9[%c0_15, %c0_16] : memref<16x128xi8, #tpu.memory_space<vmem>>, vector<16x128xi8>
    tpu.vector_store %arg9[%c0_15, %c0_16], %19 {strides = array<i32>} : memref<16x128xi8, #tpu.memory_space<vmem>>, vector<16x128xi8>,
    return
  }
  func.func @transform_0(%arg0: i32) -> (i32, i32) {
    %c0_i32 = arith.constant 0 : i32
    %c0_i32_0 = arith.constant 0 : i32
    return %arg0, %c0_i32 : i32, i32
  }
  func.func @transform_1(%arg0: i32) -> (i32, i32) {
    %c0_i32 = arith.constant 0 : i32
    %c0_i32_0 = arith.constant 0 : i32
    return %arg0, %c0_i32 : i32, i32
  }
  func.func @transform_2(%arg0: i32) -> (i32, i32) {
    %c0_i32 = arith.constant 0 : i32
    %c0_i32_0 = arith.constant 0 : i32
    return %arg0, %c0_i32 : i32, i32
  }
  func.func @transform_3(%arg0: i32) -> (i32, i32) {
    %c0_i32 = arith.constant 0 : i32
    %c0_i32_0 = arith.constant 0 : i32
    return %arg0, %c0_i32 : i32, i32
  }
  func.func @transform_4(%arg0: i32) -> (i32, i32) {
    %c0_i32 = arith.constant 0 : i32
    %c0_i32_0 = arith.constant 0 : i32
    return %arg0, %c0_i32 : i32, i32
  }
  func.func @transform_5(%arg0: i32) -> (i32, i32) {
    %c0_i32 = arith.constant 0 : i32
    %c0_i32_0 = arith.constant 0 : i32
    return %arg0, %c0_i32 : i32, i32
  }
  func.func @transform_6(%arg0: i32) -> (i32, i32) {
    %c0_i32 = arith.constant 0 : i32
    %c0_i32_0 = arith.constant 0 : i32
    return %arg0, %c0_i32 : i32, i32
  }
  func.func @transform_7(%arg0: i32) -> (i32, i32) {
    %c0_i32 = arith.constant 0 : i32
    %c0_i32_0 = arith.constant 0 : i32
    return %arg0, %c0_i32 : i32, i32
  }
  func.func @transform_8(%arg0: i32) -> (i32, i32) {
    %c0_i32 = arith.constant 0 : i32
    %c0_i32_0 = arith.constant 0 : i32
    return %arg0, %c0_i32 : i32, i32
  }
}

</mosaic_0001>

<llo_original>
// kernel: tpu_custom_call.1
$region0: #{tpu_custom_call.1}
  #allocation0 [shape = 'u32[]', space=smem, size = 0x4, offset = 0x4, fixed_abs, tag = 'smem constant byte address 0x4 - core index']
  #allocation1 [shape = 'u32[144,128]{1,0:T(1,128)}', space=vmem, size = 0x12000, scoped, tag = 'internal scratch']
  %s0 = inlined_call_operand.hbm [shape: f32[16,128], index: 0, kind: input, shape index: {}]
  %s1 = inlined_call_operand.hbm [shape: f32[16,128], index: 1, kind: input, shape index: {}]
  %s2 = inlined_call_operand.hbm [shape: f32[16,128], index: 2, kind: output, shape index: {0}]
  %s3 = inlined_call_operand.hbm [shape: f32[16,128], index: 3, kind: output, shape index: {1}]
  %s4 = inlined_call_operand.hbm [shape: f32[16,128], index: 4, kind: output, shape index: {2}]
  %s5 = inlined_call_operand.hbm [shape: f32[16,128], index: 5, kind: output, shape index: {3}]
  %s6 = inlined_call_operand.vmem [shape: s32[16,128], index: 6, kind: output, shape index: {4}]
  %s7 = inlined_call_operand.vmem [shape: s32[16,128], index: 7, kind: output, shape index: {5}]
  %s8 = inlined_call_operand.vmem [shape: s32[16,128], index: 8, kind: output, shape index: {6}]
  %9 = xla_tuple %s2, %s3, %s4, %s5, %s6, %s7, %s8
  %s10 = sld [smem:[#allocation0]]
  $region74: #{tpu_custom_call.1} parent=0
    _
  %s12 = ssub.s32 1, %s10
  %s13 = scalar_select 0, %s12, %s10
  $region1: #{tpu_custom_call.1} parent=0
    #allocation2 [shape = 'u8[8192]{0}', space=vmem, size = 0x2000, scoped, tag = 'input window, operand 0, single buffered']
    #allocation3 [shape = 's32[1]{0}', space=sflag, size = 0x4, scoped, tag = 'scoped memory for tpu_custom_call.1']
    #allocation4 [shape = 's32[1]{0}', space=sflag, size = 0x4, scoped, tag = 'scoped memory for tpu_custom_call.1']
    #allocation5 [shape = 'u8[8192]{0}', space=vmem, size = 0x2000, scoped, tag = 'input window, operand 1, single buffered']
    #allocation6 [shape = 's32[1]{0}', space=sflag, size = 0x4, scoped, tag = 'scoped memory for tpu_custom_call.1']
    #allocation7 [shape = 'u8[8192]{0}', space=vmem, size = 0x2000, scoped, tag = 'output window, operand 0, single buffered']
    #allocation8 [shape = 'u8[8192]{0}', space=vmem, size = 0x2000, scoped, tag = 'output window, operand 1, single buffered']
    #allocation9 [shape = 's32[1]{0}', space=sflag, size = 0x4, scoped, tag = 'scoped memory for tpu_custom_call.1']
    #allocation10 [shape = 'u8[8192]{0}', space=vmem, size = 0x2000, scoped, tag = 'output window, operand 2, single buffered']
    #allocation11 [shape = 'u8[8192]{0}', space=vmem, size = 0x2000, scoped, tag = 'output window, operand 3, single buffered']
    #allocation12 [shape = 's32[1]{0}', space=sflag, size = 0x4, scoped, tag = 'scoped memory for tpu_custom_call.1']
    %14 = vsyncpa [#allocation3], 0
    %15 = vsyncpa [#allocation6], 0
    %16 = vsyncpa [#allocation4], 0
    %17 = vsyncpa [#allocation9], 0
    %18 = vsyncpa [#allocation12], 0
    // Predicated region
    $region2: #{tpu_custom_call.1} parent=1 // pred_check
      _
    $region3: #{tpu_custom_call.1} parent=1 // pred_check_branch
      %20 = sbr.rel (0) target = $region5
    $region4: #{tpu_custom_call.1} parent=1 // pred_region
      %s22 = ssub.s32 256, 256
      %23 = vsyncadd [#allocation3], %s22
      %s24 = sshll.u32 [#allocation2], 4
      %s25 = int_to_ptr.vmem [resolvable:$true] %s24
      %30 = dma.hbm_to_vmem [thread:$0]  %s0, 256, %s25, [#allocation3], 128, 128, 8
    $region5: #{tpu_custom_call.1} parent=1 // pred_fallthru
      _
    // Predicated region
    $region6: #{tpu_custom_call.1} parent=1 // pred_check
      _
    $region7: #{tpu_custom_call.1} parent=1 // pred_check_branch
      %32 = sbr.rel (0) target = $region9
    $region8: #{tpu_custom_call.1} parent=1 // pred_region
      %s34 = ssub.s32 256, 256
      %35 = vsyncadd [#allocation6], %s34
      %s36 = sshll.u32 [#allocation5], 4
      %s37 = int_to_ptr.vmem [resolvable:$true] %s36
      %42 = dma.hbm_to_vmem [thread:$0]  %s1, 256, %s37, [#allocation6], 128, 128, 8
    $region9: #{tpu_custom_call.1} parent=1 // pred_fallthru
      _
    // Predicated region
    $region10: #{tpu_custom_call.1} parent=1 // pred_check
      _
    $region11: #{tpu_custom_call.1} parent=1 // pred_check_branch
      %44 = sbr.rel (0) target = $region13
    $region12: #{tpu_custom_call.1} parent=1 // pred_region
      %45 = dma.done [#allocation3], 256
    $region13: #{tpu_custom_call.1} parent=1 // pred_fallthru
      _
    // Predicated region
    $region14: #{tpu_custom_call.1} parent=1 // pred_check
      _
    $region15: #{tpu_custom_call.1} parent=1 // pred_check_branch
      %47 = sbr.rel (0) target = $region17
    $region16: #{tpu_custom_call.1} parent=1 // pred_region
      %48 = dma.done [#allocation6], 256
    $region17: #{tpu_custom_call.1} parent=1 // pred_fallthru
      _
    %v49 = vld [vmem:[#allocation2] sm:$0xff]
    %v50 = vld [vmem:[#allocation2 + $0x8] sm:$0xff]
    %v51 = vld [vmem:[#allocation5] sm:$0xff]
    %v52 = vld [vmem:[#allocation5 + $0x8] sm:$0xff]
    %v53 = vadd.f32 %v49, %v51
    %v54 = vadd.f32 %v50, %v52
    %55 = vst [vmem:[#allocation7] sm:$0xff] %v53
    %56 = vst [vmem:[#allocation7 + $0x8] sm:$0xff] %v54
    %v57 = vsub.f32 %v49, %v51
    %v58 = vsub.f32 %v50, %v52
    %59 = vst [vmem:[#allocation8] sm:$0xff] %v57
    %60 = vst [vmem:[#allocation8 + $0x8] sm:$0xff] %v58
    %v61 = vmul.f32 %v49, %v51
    %v62 = vmul.f32 %v50, %v52
    %63 = vst [vmem:[#allocation10] sm:$0xff] %v61
    %64 = vst [vmem:[#allocation10 + $0x8] sm:$0xff] %v62
    %v65 = vadd.f32 %v51, 1e-06
    %v66 = vadd.f32 %v52, 1e-06
    %v67 = vrcp.pop %v65
    %v68 = vmul.f32 %v49, %v67
    %v69 = vrcp.pop %v66
    %v70 = vmul.f32 %v50, %v69
    %71 = vst [vmem:[#allocation11] sm:$0xff] %v68
    %72 = vst [vmem:[#allocation11 + $0x8] sm:$0xff] %v70
    %vm73 = vcmp.gt.f32.partialorder %v49, %v51
    %vm74 = vcmp.gt.f32.partialorder %v50, %v52
    %v75 = vsel %vm73, 1, 0
    %v76 = vsel %vm74, 1, 0
    %77 = vst [vmem:[%s6] sm:$0xff] %v75
    %78 = vst [vmem:[%s6 + $0x8] sm:$0xff] %v76
    %vm79 = vcmp.lt.f32.partialorder %v49, %v51
    %vm80 = vcmp.lt.f32.partialorder %v50, %v52
    %v81 = vsel %vm79, 1, 0
    %v82 = vsel %vm80, 1, 0
    %83 = vst [vmem:[%s7] sm:$0xff] %v81
    %84 = vst [vmem:[%s7 + $0x8] sm:$0xff] %v82
    %vm85 = vcmp.eq.f32.partialorder %v49, %v51
    %vm86 = vcmp.eq.f32.partialorder %v50, %v52
    %v87 = vsel %vm85, 1, 0
    %v88 = vsel %vm86, 1, 0
    %89 = vst [vmem:[%s8] sm:$0xff] %v87
    %90 = vst [vmem:[%s8 + $0x8] sm:$0xff] %v88
    // Predicated region
    $region18: #{tpu_custom_call.1} parent=1 // pred_check
      _
    $region19: #{tpu_custom_call.1} parent=1 // pred_check_branch
      %92 = sbr.rel (0) target = $region21
    $region20: #{tpu_custom_call.1} parent=1 // pred_region
      %s94 = ssub.s32 256, 256
      %95 = vsyncadd [#allocation4], %s94
      %s96 = sshll.u32 [#allocation7], 4
      %s97 = int_to_ptr.vmem [resolvable:$true] %s96
      %102 = dma.vmem_to_hbm [thread:$0]  %s97, 256, %s2, [#allocation4], 128, 128, 8
    $region21: #{tpu_custom_call.1} parent=1 // pred_fallthru
      _
    // Predicated region
    $region22: #{tpu_custom_call.1} parent=1 // pred_check
      _
    $region23: #{tpu_custom_call.1} parent=1 // pred_check_branch
      %104 = sbr.rel (0) target = $region25
    $region24: #{tpu_custom_call.1} parent=1 // pred_region
      %s106 = ssub.s32 256, 256
      %107 = vsyncadd [#allocation9], %s106
      %s108 = sshll.u32 [#allocation8], 4
      %s109 = int_to_ptr.vmem [resolvable:$true] %s108
      %114 = dma.vmem_to_hbm [thread:$0]  %s109, 256, %s3, [#allocation9], 128, 128, 8
    $region25: #{tpu_custom_call.1} parent=1 // pred_fallthru
      _
    // Predicated region
    $region26: #{tpu_custom_call.1} parent=1 // pred_check
      _
    $region27: #{tpu_custom_call.1} parent=1 // pred_check_branch
      %116 = sbr.rel (0) target = $region29
    $region28: #{tpu_custom_call.1} parent=1 // pred_region
      %s118 = ssub.s32 256, 256
      %119 = vsyncadd [#allocation9], %s118
      %s120 = sshll.u32 [#allocation10], 4
      %s121 = int_to_ptr.vmem [resolvable:$true] %s120
      %126 = dma.vmem_to_hbm [thread:$0]  %s121, 256, %s4, [#allocation9], 128, 128, 8
    $region29: #{tpu_custom_call.1} parent=1 // pred_fallthru
      _
    // Predicated region
    $region30: #{tpu_custom_call.1} parent=1 // pred_check
      _
    $region31: #{tpu_custom_call.1} parent=1 // pred_check_branch
      %128 = sbr.rel (0) target = $region33
    $region32: #{tpu_custom_call.1} parent=1 // pred_region
      %s130 = ssub.s32 256, 256
      %131 = vsyncadd [#allocation12], %s130
      %s132 = sshll.u32 [#allocation11], 4
      %s133 = int_to_ptr.vmem [resolvable:$true] %s132
      %138 = dma.vmem_to_hbm [thread:$0]  %s133, 256, %s5, [#allocation12], 128, 128, 8
    $region33: #{tpu_custom_call.1} parent=1 // pred_fallthru
      _
    // Predicated region
    $region34: #{tpu_custom_call.1} parent=1 // pred_check
      _
    $region35: #{tpu_custom_call.1} parent=1 // pred_check_branch
      %140 = sbr.rel (0) target = $region37
    $region36: #{tpu_custom_call.1} parent=1 // pred_region
      _
    $region37: #{tpu_custom_call.1} parent=1 // pred_fallthru
      _
    // Predicated region
    $region38: #{tpu_custom_call.1} parent=1 // pred_check
      _
    $region39: #{tpu_custom_call.1} parent=1 // pred_check_branch
      %142 = sbr.rel (0) target = $region41
    $region40: #{tpu_custom_call.1} parent=1 // pred_region
      _
    $region41: #{tpu_custom_call.1} parent=1 // pred_fallthru
      _
    // Predicated region
    $region42: #{tpu_custom_call.1} parent=1 // pred_check
      _
    $region43: #{tpu_custom_call.1} parent=1 // pred_check_branch
      %144 = sbr.rel (0) target = $region45
    $region44: #{tpu_custom_call.1} parent=1 // pred_region
      _
    $region45: #{tpu_custom_call.1} parent=1 // pred_fallthru
      _
    // Predicated region
    $region46: #{tpu_custom_call.1} parent=1 // pred_check
      _
    $region47: #{tpu_custom_call.1} parent=1 // pred_check_branch
      %146 = sbr.rel (0) target = $region49
    $region48: #{tpu_custom_call.1} parent=1 // pred_region
      %147 = dma.done [#allocation4], 256
    $region49: #{tpu_custom_call.1} parent=1 // pred_fallthru
      _
    // Predicated region
    $region50: #{tpu_custom_call.1} parent=1 // pred_check
      _
    $region51: #{tpu_custom_call.1} parent=1 // pred_check_branch
      %149 = sbr.rel (0) target = $region53
    $region52: #{tpu_custom_call.1} parent=1 // pred_region
      %150 = dma.done [#allocation9], 256
    $region53: #{tpu_custom_call.1} parent=1 // pred_fallthru
      _
    // Predicated region
    $region54: #{tpu_custom_call.1} parent=1 // pred_check
      _
    $region55: #{tpu_custom_call.1} parent=1 // pred_check_branch
      %152 = sbr.rel (0) target = $region57
    $region56: #{tpu_custom_call.1} parent=1 // pred_region
      %153 = dma.done [#allocation9], 256
    $region57: #{tpu_custom_call.1} parent=1 // pred_fallthru
      _
    // Predicated region
    $region58: #{tpu_custom_call.1} parent=1 // pred_check
      _
    $region59: #{tpu_custom_call.1} parent=1 // pred_check_branch
      %155 = sbr.rel (0) target = $region61
    $region60: #{tpu_custom_call.1} parent=1 // pred_region
      %156 = dma.done [#allocation12], 256
    $region61: #{tpu_custom_call.1} parent=1 // pred_fallthru
      _
    // Predicated region
    $region62: #{tpu_custom_call.1} parent=1 // pred_check
      _
    $region63: #{tpu_custom_call.1} parent=1 // pred_check_branch
      %158 = sbr.rel (0) target = $region65
    $region64: #{tpu_custom_call.1} parent=1 // pred_region
      _
    $region65: #{tpu_custom_call.1} parent=1 // pred_fallthru
      _
    // Predicated region
    $region66: #{tpu_custom_call.1} parent=1 // pred_check
      _
    $region67: #{tpu_custom_call.1} parent=1 // pred_check_branch
      %160 = sbr.rel (0) target = $region69
    $region68: #{tpu_custom_call.1} parent=1 // pred_region
      _
    $region69: #{tpu_custom_call.1} parent=1 // pred_fallthru
      _
    // Predicated region
    $region70: #{tpu_custom_call.1} parent=1 // pred_check
      _
    $region71: #{tpu_custom_call.1} parent=1 // pred_check_branch
      %162 = sbr.rel (0) target = $region73
    $region72: #{tpu_custom_call.1} parent=1 // pred_region
      _
    $region73: #{tpu_custom_call.1} parent=1 // pred_fallthru
      _
    %163 = vsyncpa [#allocation3], 1
    %164 = vsyncpa [#allocation6], 1
    %165 = vsyncpa [#allocation4], 1
    %166 = vsyncpa [#allocation9], 1
    %167 = vsyncpa [#allocation12], 1

// kernel: tpu_custom_call.1
$region0: #{tpu_custom_call.1}
  #allocation0 [shape = 'u32[]', space=smem, size = 0x4, offset = 0x4, fixed_abs, tag = 'smem constant byte address 0x4 - core index']
  #allocation1 [shape = 'u32[144,128]{1,0:T(1,128)}', space=vmem, size = 0x12000, scoped, tag = 'internal scratch']
  %s0 = inlined_call_operand.hbm [shape: f32[16,128], index: 0, kind: input, shape index: {}]
  %s1 = inlined_call_operand.hbm [shape: f32[16,128], index: 1, kind: input, shape index: {}]
  %s2 = inlined_call_operand.hbm [shape: f32[16,128], index: 2, kind: output, shape index: {0}]
  %s3 = inlined_call_operand.hbm [shape: f32[16,128], index: 3, kind: output, shape index: {1}]
  %s4 = inlined_call_operand.hbm [shape: f32[16,128], index: 4, kind: output, shape index: {2}]
  %s5 = inlined_call_operand.hbm [shape: f32[16,128], index: 5, kind: output, shape index: {3}]
  %s6 = inlined_call_operand.hbm [shape: u8[16,128], index: 6, kind: output, shape index: {4}]
  %s7 = inlined_call_operand.hbm [shape: u8[16,128], index: 7, kind: output, shape index: {5}]
  %s8 = inlined_call_operand.hbm [shape: u8[16,128], index: 8, kind: output, shape index: {6}]
  %9 = xla_tuple %s2, %s3, %s4, %s5, %s6, %s7, %s8
  %s10 = sld [smem:[#allocation0]]
  $region74: #{tpu_custom_call.1} parent=0
    _
  %s12 = ssub.s32 1, %s10
  %s13 = scalar_select 0, %s12, %s10
  $region1: #{tpu_custom_call.1} parent=0
    #allocation2 [shape = 'u8[8192]{0}', space=vmem, size = 0x2000, scoped, tag = 'input window, operand 0, single buffered']
    #allocation3 [shape = 's32[1]{0}', space=sflag, size = 0x4, scoped, tag = 'scoped memory for tpu_custom_call.1']
    #allocation4 [shape = 's32[1]{0}', space=sflag, size = 0x4, scoped, tag = 'scoped memory for tpu_custom_call.1']
    #allocation5 [shape = 'u8[8192]{0}', space=vmem, size = 0x2000, scoped, tag = 'input window, operand 1, single buffered']
    #allocation6 [shape = 's32[1]{0}', space=sflag, size = 0x4, scoped, tag = 'scoped memory for tpu_custom_call.1']
    #allocation7 [shape = 'u8[8192]{0}', space=vmem, size = 0x2000, scoped, tag = 'output window, operand 0, single buffered']
    #allocation8 [shape = 'u8[8192]{0}', space=vmem, size = 0x2000, scoped, tag = 'output window, operand 1, single buffered']
    #allocation9 [shape = 's32[1]{0}', space=sflag, size = 0x4, scoped, tag = 'scoped memory for tpu_custom_call.1']
    #allocation10 [shape = 'u8[8192]{0}', space=vmem, size = 0x2000, scoped, tag = 'output window, operand 2, single buffered']
    #allocation11 [shape = 'u8[8192]{0}', space=vmem, size = 0x2000, scoped, tag = 'output window, operand 3, single buffered']
    #allocation12 [shape = 's32[1]{0}', space=sflag, size = 0x4, scoped, tag = 'scoped memory for tpu_custom_call.1']
    #allocation13 [shape = 'u8[2048]{0}', space=vmem, size = 0x800, scoped, tag = 'output window, operand 4, single buffered']
    #allocation14 [shape = 'u8[2048]{0}', space=vmem, size = 0x800, scoped, tag = 'output window, operand 5, single buffered']
    #allocation15 [shape = 's32[1]{0}', space=sflag, size = 0x4, scoped, tag = 'scoped memory for tpu_custom_call.1']
    #allocation16 [shape = 'u8[2048]{0}', space=vmem, size = 0x800, scoped, tag = 'output window, operand 6, single buffered']
    %14 = vsyncpa [#allocation3], 0
    %15 = vsyncpa [#allocation6], 0
    %16 = vsyncpa [#allocation4], 0
    %17 = vsyncpa [#allocation9], 0
    %18 = vsyncpa [#allocation12], 0
    %19 = vsyncpa [#allocation15], 0
    // Predicated region
    $region2: #{tpu_custom_call.1} parent=1 // pred_check
      _
    $region3: #{tpu_custom_call.1} parent=1 // pred_check_branch
      %21 = sbr.rel (0) target = $region5
    $region4: #{tpu_custom_call.1} parent=1 // pred_region
      %s23 = ssub.s32 256, 256
      %24 = vsyncadd [#allocation3], %s23
      %s25 = sshll.u32 [#allocation2], 4
      %s26 = int_to_ptr.vmem [resolvable:$true] %s25
      %31 = dma.hbm_to_vmem [thread:$0]  %s0, 256, %s26, [#allocation3], 128, 128, 8
    $region5: #{tpu_custom_call.1} parent=1 // pred_fallthru
      _
    // Predicated region
    $region6: #{tpu_custom_call.1} parent=1 // pred_check
      _
    $region7: #{tpu_custom_call.1} parent=1 // pred_check_branch
      %33 = sbr.rel (0) target = $region9
    $region8: #{tpu_custom_call.1} parent=1 // pred_region
      %s35 = ssub.s32 256, 256
      %36 = vsyncadd [#allocation6], %s35
      %s37 = sshll.u32 [#allocation5], 4
      %s38 = int_to_ptr.vmem [resolvable:$true] %s37
      %43 = dma.hbm_to_vmem [thread:$0]  %s1, 256, %s38, [#allocation6], 128, 128, 8
    $region9: #{tpu_custom_call.1} parent=1 // pred_fallthru
      _
    // Predicated region
    $region10: #{tpu_custom_call.1} parent=1 // pred_check
      _
    $region11: #{tpu_custom_call.1} parent=1 // pred_check_branch
      %45 = sbr.rel (0) target = $region13
    $region12: #{tpu_custom_call.1} parent=1 // pred_region
      %46 = dma.done [#allocation3], 256
    $region13: #{tpu_custom_call.1} parent=1 // pred_fallthru
      _
    // Predicated region
    $region14: #{tpu_custom_call.1} parent=1 // pred_check
      _
    $region15: #{tpu_custom_call.1} parent=1 // pred_check_branch
      %48 = sbr.rel (0) target = $region17
    $region16: #{tpu_custom_call.1} parent=1 // pred_region
      %49 = dma.done [#allocation6], 256
    $region17: #{tpu_custom_call.1} parent=1 // pred_fallthru
      _
    %v52 = vld [vmem:[#allocation2] sm:$0xff]
    %v53 = vld [vmem:[#allocation2 + $0x8] sm:$0xff]
    %v54 = vld [vmem:[#allocation5] sm:$0xff]
    %v55 = vld [vmem:[#allocation5 + $0x8] sm:$0xff]
    %v56 = vadd.f32 %v52, %v54
    %v57 = vadd.f32 %v53, %v55
    %58 = vst [vmem:[#allocation7] sm:$0xff] %v56
    %59 = vst [vmem:[#allocation7 + $0x8] sm:$0xff] %v57
    %v60 = vsub.f32 %v52, %v54
    %v61 = vsub.f32 %v53, %v55
    %62 = vst [vmem:[#allocation8] sm:$0xff] %v60
    %63 = vst [vmem:[#allocation8 + $0x8] sm:$0xff] %v61
    %v64 = vmul.f32 %v52, %v54
    %v65 = vmul.f32 %v53, %v55
    %66 = vst [vmem:[#allocation10] sm:$0xff] %v64
    %67 = vst [vmem:[#allocation10 + $0x8] sm:$0xff] %v65
    %v68 = vadd.f32 %v54, 1e-06
    %v69 = vadd.f32 %v55, 1e-06
    %v70 = vrcp.pop %v68
    %v71 = vmul.f32 %v52, %v70
    %v72 = vrcp.pop %v69
    %v73 = vmul.f32 %v53, %v72
    %74 = vst [vmem:[#allocation11] sm:$0xff] %v71
    %75 = vst [vmem:[#allocation11 + $0x8] sm:$0xff] %v73
    %vm76 = vcmp.gt.f32.partialorder %v52, %v54
    %vm77 = vcmp.gt.f32.partialorder %v53, %v55
    %vm78 = vmpackc.low %vm77, %vm76
    %vm79 = vmpackc.even %vm78, %vm78
    %v80 = vsel %vm79, 16843009, 0
    %v81 = vunpack.c.0.s8 %v80
    %v82 = vunpack.c.1.s8 %v80
    %v83 = vpack.c.b16 %v81, %v81
    %v84 = vpack.c.b8 %v83, %v83
    %v85 = vpack.c.b16 %v82, %v82
    %v86 = vpack.c.b8 %v85, %v85
    %87 = vst [vmem:[#allocation13] sm:$0x3] %v84
    %88 = vst [vmem:[#allocation13 + $0x2] sm:$0x3] %v86
    %vm89 = vcmp.lt.f32.partialorder %v52, %v54
    %vm90 = vcmp.lt.f32.partialorder %v53, %v55
    %vm91 = vmpackc.low %vm90, %vm89
    %vm92 = vmpackc.even %vm91, %vm91
    %v93 = vsel %vm92, 16843009, 0
    %v94 = vunpack.c.0.s8 %v93
    %v95 = vunpack.c.1.s8 %v93
    %v96 = vpack.c.b16 %v94, %v94
    %v97 = vpack.c.b8 %v96, %v96
    %v98 = vpack.c.b16 %v95, %v95
    %v99 = vpack.c.b8 %v98, %v98
    %100 = vst [vmem:[#allocation14] sm:$0x3] %v97
    %101 = vst [vmem:[#allocation14 + $0x2] sm:$0x3] %v99
    %vm102 = vcmp.eq.f32.partialorder %v52, %v54
    %vm103 = vcmp.eq.f32.partialorder %v53, %v55
    %vm104 = vmpackc.low %vm103, %vm102
    %vm105 = vmpackc.even %vm104, %vm104
    %v106 = vsel %vm105, 16843009, 0
    %v107 = vunpack.c.0.s8 %v106
    %v108 = vunpack.c.1.s8 %v106
    %v109 = vpack.c.b16 %v107, %v107
    %v110 = vpack.c.b8 %v109, %v109
    %v111 = vpack.c.b16 %v108, %v108
    %v112 = vpack.c.b8 %v111, %v111
    %113 = vst [vmem:[#allocation16] sm:$0x3] %v110
    %114 = vst [vmem:[#allocation16 + $0x2] sm:$0x3] %v112
    // Predicated region
    $region18: #{tpu_custom_call.1} parent=1 // pred_check
      _
    $region19: #{tpu_custom_call.1} parent=1 // pred_check_branch
      %116 = sbr.rel (0) target = $region21
    $region20: #{tpu_custom_call.1} parent=1 // pred_region
      %s118 = ssub.s32 256, 256
      %119 = vsyncadd [#allocation4], %s118
      %s120 = sshll.u32 [#allocation7], 4
      %s121 = int_to_ptr.vmem [resolvable:$true] %s120
      %126 = dma.vmem_to_hbm [thread:$0]  %s121, 256, %s2, [#allocation4], 128, 128, 8
    $region21: #{tpu_custom_call.1} parent=1 // pred_fallthru
      _
    // Predicated region
    $region22: #{tpu_custom_call.1} parent=1 // pred_check
      _
    $region23: #{tpu_custom_call.1} parent=1 // pred_check_branch
      %128 = sbr.rel (0) target = $region25
    $region24: #{tpu_custom_call.1} parent=1 // pred_region
      %s130 = ssub.s32 256, 256
      %131 = vsyncadd [#allocation9], %s130
      %s132 = sshll.u32 [#allocation8], 4
      %s133 = int_to_ptr.vmem [resolvable:$true] %s132
      %138 = dma.vmem_to_hbm [thread:$0]  %s133, 256, %s3, [#allocation9], 128, 128, 8
    $region25: #{tpu_custom_call.1} parent=1 // pred_fallthru
      _
    // Predicated region
    $region26: #{tpu_custom_call.1} parent=1 // pred_check
      _
    $region27: #{tpu_custom_call.1} parent=1 // pred_check_branch
      %140 = sbr.rel (0) target = $region29
    $region28: #{tpu_custom_call.1} parent=1 // pred_region
      %s142 = ssub.s32 256, 256
      %143 = vsyncadd [#allocation9], %s142
      %s144 = sshll.u32 [#allocation10], 4
      %s145 = int_to_ptr.vmem [resolvable:$true] %s144
      %150 = dma.vmem_to_hbm [thread:$0]  %s145, 256, %s4, [#allocation9], 128, 128, 8
    $region29: #{tpu_custom_call.1} parent=1 // pred_fallthru
      _
    // Predicated region
    $region30: #{tpu_custom_call.1} parent=1 // pred_check
      _
    $region31: #{tpu_custom_call.1} parent=1 // pred_check_branch
      %152 = sbr.rel (0) target = $region33
    $region32: #{tpu_custom_call.1} parent=1 // pred_region
      %s154 = ssub.s32 256, 256
      %155 = vsyncadd [#allocation12], %s154
      %s156 = sshll.u32 [#allocation11], 4
      %s157 = int_to_ptr.vmem [resolvable:$true] %s156
      %162 = dma.vmem_to_hbm [thread:$0]  %s157, 256, %s5, [#allocation12], 128, 128, 8
    $region33: #{tpu_custom_call.1} parent=1 // pred_fallthru
      _
    // Predicated region
    $region34: #{tpu_custom_call.1} parent=1 // pred_check
      _
    $region35: #{tpu_custom_call.1} parent=1 // pred_check_branch
      %164 = sbr.rel (0) target = $region37
    $region36: #{tpu_custom_call.1} parent=1 // pred_region
      %s166 = ssub.s32 64, 64
      %167 = vsyncadd [#allocation12], %s166
      %s168 = sshll.u32 [#allocation13], 4
      %s169 = int_to_ptr.vmem [resolvable:$true] %s168
      %174 = dma.vmem_to_hbm [thread:$0]  %s169, 64, %s6, [#allocation12], 32, 32, 2
    $region37: #{tpu_custom_call.1} parent=1 // pred_fallthru
      _
    // Predicated region
    $region38: #{tpu_custom_call.1} parent=1 // pred_check
      _
    $region39: #{tpu_custom_call.1} parent=1 // pred_check_branch
      %176 = sbr.rel (0) target = $region41
    $region40: #{tpu_custom_call.1} parent=1 // pred_region
      %s178 = ssub.s32 64, 64
      %179 = vsyncadd [#allocation15], %s178
      %s180 = sshll.u32 [#allocation14], 4
      %s181 = int_to_ptr.vmem [resolvable:$true] %s180
      %186 = dma.vmem_to_hbm [thread:$0]  %s181, 64, %s7, [#allocation15], 32, 32, 2
    $region41: #{tpu_custom_call.1} parent=1 // pred_fallthru
      _
    // Predicated region
    $region42: #{tpu_custom_call.1} parent=1 // pred_check
      _
    $region43: #{tpu_custom_call.1} parent=1 // pred_check_branch
      %188 = sbr.rel (0) target = $region45
    $region44: #{tpu_custom_call.1} parent=1 // pred_region
      %s190 = ssub.s32 64, 64
      %191 = vsyncadd [#allocation15], %s190
      %s192 = sshll.u32 [#allocation16], 4
      %s193 = int_to_ptr.vmem [resolvable:$true] %s192
      %198 = dma.vmem_to_hbm [thread:$0]  %s193, 64, %s8, [#allocation15], 32, 32, 2
    $region45: #{tpu_custom_call.1} parent=1 // pred_fallthru
      _
    // Predicated region
    $region46: #{tpu_custom_call.1} parent=1 // pred_check
      _
    $region47: #{tpu_custom_call.1} parent=1 // pred_check_branch
      %200 = sbr.rel (0) target = $region49
    $region48: #{tpu_custom_call.1} parent=1 // pred_region
      %201 = dma.done [#allocation4], 256
    $region49: #{tpu_custom_call.1} parent=1 // pred_fallthru
      _
    // Predicated region
    $region50: #{tpu_custom_call.1} parent=1 // pred_check
      _
    $region51: #{tpu_custom_call.1} parent=1 // pred_check_branch
      %203 = sbr.rel (0) target = $region53
    $region52: #{tpu_custom_call.1} parent=1 // pred_region
      %204 = dma.done [#allocation9], 256
    $region53: #{tpu_custom_call.1} parent=1 // pred_fallthru
      _
    // Predicated region
    $region54: #{tpu_custom_call.1} parent=1 // pred_check
      _
    $region55: #{tpu_custom_call.1} parent=1 // pred_check_branch
      %206 = sbr.rel (0) target = $region57
    $region56: #{tpu_custom_call.1} parent=1 // pred_region
      %207 = dma.done [#allocation9], 256
    $region57: #{tpu_custom_call.1} parent=1 // pred_fallthru
      _
    // Predicated region
    $region58: #{tpu_custom_call.1} parent=1 // pred_check
      _
    $region59: #{tpu_custom_call.1} parent=1 // pred_check_branch
      %209 = sbr.rel (0) target = $region61
    $region60: #{tpu_custom_call.1} parent=1 // pred_region
      %210 = dma.done [#allocation12], 256
    $region61: #{tpu_custom_call.1} parent=1 // pred_fallthru
      _
    // Predicated region
    $region62: #{tpu_custom_call.1} parent=1 // pred_check
      _
    $region63: #{tpu_custom_call.1} parent=1 // pred_check_branch
      %212 = sbr.rel (0) target = $region65
    $region64: #{tpu_custom_call.1} parent=1 // pred_region
      %213 = dma.done [#allocation12], 64
    $region65: #{tpu_custom_call.1} parent=1 // pred_fallthru
      _
    // Predicated region
    $region66: #{tpu_custom_call.1} parent=1 // pred_check
      _
    $region67: #{tpu_custom_call.1} parent=1 // pred_check_branch
      %215 = sbr.rel (0) target = $region69
    $region68: #{tpu_custom_call.1} parent=1 // pred_region
      %216 = dma.done [#allocation15], 64
    $region69: #{tpu_custom_call.1} parent=1 // pred_fallthru
      _
    // Predicated region
    $region70: #{tpu_custom_call.1} parent=1 // pred_check
      _
    $region71: #{tpu_custom_call.1} parent=1 // pred_check_branch
      %218 = sbr.rel (0) target = $region73
    $region72: #{tpu_custom_call.1} parent=1 // pred_region
      %219 = dma.done [#allocation15], 64
    $region73: #{tpu_custom_call.1} parent=1 // pred_fallthru
      _
    %220 = vsyncpa [#allocation3], 1
    %221 = vsyncpa [#allocation6], 1
    %222 = vsyncpa [#allocation4], 1
    %223 = vsyncpa [#allocation9], 1
    %224 = vsyncpa [#allocation12], 1
    %225 = vsyncpa [#allocation15], 1

</llo_original>
